<compile_context>
chip_gen: v7x
topology: tpu7x:2x2x1
jax: 0.10.0
libtpu: 0.0.40
codegen_flags: <defaults>
</compile_context>

<pallas_src>
import jax
import jax.numpy as jnp
from jax import lax
from jax.experimental import pallas as pl
from jax.experimental.pallas import tpu as pltpu

EPS = 1e-6

# VMEM budget for the double-buffered input blocks (2 bufs * TR * THW * 4B).
# Conservative for v7x (64 MiB physical, 32 MiB scoped default); on v5e/v6e
# this still yields tiles far past the ~512-row HBM-roofline knee.
_VMEM_INPUT_BUDGET = 20 * 1024 * 1024
_VMEM_LIMIT_BYTES = 32 * 1024 * 1024   # raise v5e's 16 MiB scoped default
_MAX_THW = 2048                        # lanes per HW tile (f32: 8 KiB / row)
_MAX_TR = 2048                         # beyond this, bigger row tiles add no BW


def _round_up(a, b):
    return ((a + b - 1) // b) * b


def _make_gem_kernel(hw, thw, eps):
    def kernel(p_ref, x_ref, o_ref, acc_ref):
        k = pl.program_id(1)

        @pl.when(k == 0)
        def _():
            acc_ref[...] = jnp.zeros_like(acc_ref)

        p = p_ref[0]
        x = x_ref[...].astype(jnp.float32)
        xc = jnp.maximum(x, eps)                      # clamp(min=eps)
        # x^p with a traced (learnable) exponent: exp(p * log(x)), x > 0 after clamp.
        # NOTE: on v6e/v7x a bf16 log/exp path would relieve the EUP if it ever
        # becomes the binding unit; kept f32 here for exactness vs the reference.
        xp = jnp.exp(p * jnp.log(xc))
        # Mask out lane-padding columns (HW padded to a multiple of 128 and a
        # possibly-ragged last HW block) so they don't pollute the mean.
        col = k * thw + lax.broadcasted_iota(jnp.int32, xp.shape, 1)
        xp = jnp.where(col < hw, xp, 0.0)
        acc_ref[...] += jnp.sum(xp, axis=-1, keepdims=True)

        @pl.when(k == pl.num_programs(1) - 1)
        def _():
            m = acc_ref[...] * (1.0 / hw)             # mean over the true H*W
            o_ref[...] = jnp.exp(jnp.log(m) / p).astype(o_ref.dtype)  # ^(1/p)

    return kernel


def gem_pallas(x, p, eps=EPS):
    """x: (N, C, H, W) float32; p: (1,) float32 (learnable exponent)."""
    N, C, H, W = x.shape
    R = N * C
    HW = H * W
    x2 = x.reshape(R, HW)

    # Lane-dense width: pad H*W up to a multiple of 128 (padding masked in-kernel).
    HW_pad = _round_up(max(HW, 128), 128)
    if HW_pad != HW:
        x2 = jnp.pad(x2, ((0, 0), (0, HW_pad - HW)))
    THW = min(HW_pad, _MAX_THW)

    # Row tile: largest multiple of 8 keeping the 2 double-buffered (TR, THW)
    # f32 input blocks under the VMEM budget; capped so large R still leaves
    # >= 2 row blocks for megacore (v7x has 2 TensorCores per chip).
    tr_budget = _VMEM_INPUT_BUDGET // (2 * THW * 4)
    TR = max(8, (tr_budget // 8) * 8)
    TR = min(TR, _MAX_TR, _round_up(R, 8))
    if R >= 16:
        TR = min(TR, max(8, _round_up(pl.cdiv(R, 2), 8)))
    if R < 8:
        TR = R  # full extent is always a legal sublane block

    grid = (pl.cdiv(R, TR), pl.cdiv(HW_pad, THW))

    kernel = _make_gem_kernel(HW, THW, eps)

    out = pl.pallas_call(
        kernel,
        out_shape=jax.ShapeDtypeStruct((R, 1), x.dtype),
        grid=grid,
        in_specs=[
            pl.BlockSpec(memory_space=pltpu.SMEM),             # p (scalar param)
            pl.BlockSpec((TR, THW), lambda i, k: (i, k)),      # x row/HW tiles
        ],
        out_specs=pl.BlockSpec((TR, 1), lambda i, k: (i, 0)),  # resident across k
        scratch_shapes=[pltpu.VMEM((TR, 1), jnp.float32)],     # per-row sum acc
        compiler_params=pltpu.CompilerParams(
            dimension_semantics=("parallel", "arbitrary"),
            vmem_limit_bytes=_VMEM_LIMIT_BYTES,
        ),
    )(p, x2)

    return out.reshape(N, C, 1, 1)


def gem_reference(x, p, eps=EPS):
    xc = jnp.maximum(x, eps)
    xp = xc ** p[0]
    m = jnp.mean(xp, axis=(-2, -1), keepdims=True)
    return m ** (1.0 / p[0])


if __name__ == "__main__":
    key = jax.random.PRNGKey(0)
    # Small shapes consistent with the module's forward (NCHW).
    N, C, H, W = 2, 4, 16, 16
    x = jax.random.uniform(key, (N, C, H, W), dtype=jnp.float32, minval=-0.5, maxval=2.0)

    # GeM.__init__: p = nn.Parameter(torch.ones(1) * 3)  -> deterministic init
    p = jnp.ones((1,), dtype=jnp.float32) * 3.0

    y = gem_pallas(x, p)
    jax.block_until_ready(y)

    y_ref = gem_reference(x, p)
    assert y.shape == (N, C, 1, 1)
    assert jnp.allclose(y, y_ref, atol=1e-4, rtol=1e-4), (
        f"max abs err {jnp.max(jnp.abs(y - y_ref))}"
    )
    print("KERNEL_OK")
</pallas_src>

<mosaic_0001>
module attributes {stable_mosaic.version = 11 : i64} {
  func.func @kernel(%arg0: i32, %arg1: i32, %arg2: memref<1xf32, #tpu.memory_space<smem>>, %arg3: memref<8x256xf32, #tpu.memory_space<vmem>>, %arg4: memref<8x1xf32, #tpu.memory_space<vmem>>, %arg5: memref<8x1xf32, #tpu.memory_space<vmem>>) attributes {dimension_semantics = [#tpu.dimension_semantics<parallel>, #tpu.dimension_semantics<arbitrary>], iteration_bounds = array<i64: 1, 1>, scalar_prefetch = 0 : i64, scratch_operands = 1 : i64, tpu.core_type = #tpu.core_type<tc>, window_params = [{transform_indices = @transform_0, window_bounds = array<i64: 1>}, {transform_indices = @transform_1, window_bounds = array<i64: 8, 256>}, {transform_indices = @transform_2, window_bounds = array<i64: 8, 1>}]} {
    %c0_i32 = arith.constant 0 : i32
    %0 = arith.cmpi eq, %arg1, %c0_i32 : i32
    %1 = arith.extui %0 : i1 to i32
    %c0_i32_0 = arith.constant 0 : i32
    %2 = arith.cmpi ne, %1, %c0_i32_0 : i32
    scf.if %2 {
      %cst_12 = arith.constant 0.000000e+00 : f32
      %27 = vector.broadcast %cst_12 : f32 to vector<8x1xf32>
      %c0_13 = arith.constant 0 : index
      %c0_14 = arith.constant 0 : index
      %28 = vector.load %arg5[%c0_13, %c0_14] : memref<8x1xf32, #tpu.memory_space<vmem>>, vector<8x1xf32>
      tpu.vector_store %arg5[%c0_13, %c0_14], %27 {strides = array<i32>} : memref<8x1xf32, #tpu.memory_space<vmem>>, vector<8x1xf32>,
    } else {
    }
    %c0 = arith.constant 0 : index
    %3 = memref.load %arg2[%c0] : memref<1xf32, #tpu.memory_space<smem>>
    %c0_1 = arith.constant 0 : index
    %c0_2 = arith.constant 0 : index
    %4 = vector.load %arg3[%c0_1, %c0_2] : memref<8x256xf32, #tpu.memory_space<vmem>>, vector<8x256xf32>
    %cst = arith.constant 9.99999997E-7 : f32
    %5 = vector.broadcast %cst : f32 to vector<8x256xf32>
    %6 = arith.maximumf %4, %5 : vector<8x256xf32>
    %7 = math.log %6 : vector<8x256xf32>
    %8 = vector.broadcast %3 : f32 to vector<8x256xf32>
    %9 = arith.mulf %8, %7 : vector<8x256xf32>
    %10 = math.exp %9 : vector<8x256xf32>
    %c256_i32 = arith.constant 256 : i32
    %11 = arith.muli %arg1, %c256_i32 : i32
    %12 = tpu.iota {dimensions = array<i32: 1>} : vector<8x256xi32>
    %13 = vector.broadcast %11 : i32 to vector<8x256xi32>
    %14 = arith.addi %13, %12 : vector<8x256xi32>
    %c256_i32_3 = arith.constant 256 : i32
    %15 = vector.broadcast %c256_i32_3 : i32 to vector<8x256xi32>
    %16 = arith.cmpi slt, %14, %15 : vector<8x256xi32>
    %cst_4 = arith.constant 0.000000e+00 : f32
    %17 = vector.broadcast %cst_4 : f32 to vector<8x256xf32>
    %18 = arith.select %16, %10, %17 : vector<8x256xi1>, vector<8x256xf32>
    %c0_5 = arith.constant 0 : index
    %c0_6 = arith.constant 0 : index
    %19 = vector.load %arg5[%c0_5, %c0_6] : memref<8x1xf32, #tpu.memory_space<vmem>>, vector<8x1xf32>
    %cst_7 = arith.constant dense<0.000000e+00> : vector<8xf32>
    %20 = vector.multi_reduction <add>, %18, %cst_7 [1] : vector<8x256xf32> to vector<8xf32>
    %21 = vector.shape_cast %20 : vector<8xf32> to vector<8x1xf32>
    %22 = arith.addf %19, %21 : vector<8x1xf32>
    %c0_8 = arith.constant 0 : index
    %c0_9 = arith.constant 0 : index
    %23 = vector.load %arg5[%c0_8, %c0_9] : memref<8x1xf32, #tpu.memory_space<vmem>>, vector<8x1xf32>
    tpu.vector_store %arg5[%c0_8, %c0_9], %22 {strides = array<i32>} : memref<8x1xf32, #tpu.memory_space<vmem>>, vector<8x1xf32>,
    %c0_i32_10 = arith.constant 0 : i32
    %24 = arith.cmpi eq, %arg1, %c0_i32_10 : i32
    %25 = arith.extui %24 : i1 to i32
    %c0_i32_11 = arith.constant 0 : i32
    %26 = arith.cmpi ne, %25, %c0_i32_11 : i32
    scf.if %26 {
      %c0_12 = arith.constant 0 : index
      %c0_13 = arith.constant 0 : index
      %27 = vector.load %arg5[%c0_12, %c0_13] : memref<8x1xf32, #tpu.memory_space<vmem>>, vector<8x1xf32>
      %cst_14 = arith.constant 3.906250e-03 : f32
      %28 = vector.broadcast %cst_14 : f32 to vector<8x1xf32>
      %29 = arith.mulf %27, %28 : vector<8x1xf32>
      %30 = math.log %29 : vector<8x1xf32>
      %31 = vector.broadcast %3 : f32 to vector<8x1xf32>
      %32 = arith.divf %30, %31 : vector<8x1xf32>
      %33 = math.exp %32 : vector<8x1xf32>
      %c0_15 = arith.constant 0 : index
      %c0_16 = arith.constant 0 : index
      %34 = vector.load %arg4[%c0_15, %c0_16] : memref<8x1xf32, #tpu.memory_space<vmem>>, vector<8x1xf32>
      tpu.vector_store %arg4[%c0_15, %c0_16], %33 {strides = array<i32>} : memref<8x1xf32, #tpu.memory_space<vmem>>, vector<8x1xf32>,
    } else {
    }
    return
  }
  func.func @transform_0(%arg0: i32, %arg1: i32) -> i32 {
    %c0_i32 = arith.constant 0 : i32
    %c0_i32_0 = arith.constant 0 : i32
    return %c0_i32 : i32
  }
  func.func @transform_1(%arg0: i32, %arg1: i32) -> (i32, i32) {
    %c0_i32 = arith.constant 0 : i32
    return %arg0, %arg1 : i32, i32
  }
  func.func @transform_2(%arg0: i32, %arg1: i32) -> (i32, i32) {
    %c0_i32 = arith.constant 0 : i32
    %c0_i32_0 = arith.constant 0 : i32
    return %arg0, %c0_i32 : i32, i32
  }
}

</mosaic_0001>

<llo_original>
// kernel: tpu_custom_call.1
$region0: #{tpu_custom_call.1}
  #allocation0 [shape = 'u32[]', space=smem, size = 0x4, offset = 0x4, fixed_abs, tag = 'smem constant byte address 0x4 - core index']
  #allocation1 [shape = 'u32[144,128]{1,0:T(1,128)}', space=vmem, size = 0x12000, scoped, tag = 'internal scratch']
  #allocation2 [shape = 'f32[8,1]{1,0:T(8,128)}', space=vmem, size = 0x1000, scoped, tag = 'scratch operand']
  #allocation3 [shape = 'f32[1]{0:T(128)S(6)}', space=smem, size = 0x200, scoped, tag = 'scoped memory for tpu_custom_call.1']
  %s0 = inlined_call_operand.<no memory space> [shape: f32[1], index: 0, kind: input, shape index: {}]
  %s1 = inlined_call_operand.hbm [shape: f32[8,256], index: 1, kind: input, shape index: {}]
  %s2 = inlined_call_operand.vmem [shape: f32[8,1], index: 2, kind: output, shape index: {}]
  %s3 = sld [smem:[#allocation0]]
  $region30: #{tpu_custom_call.1} parent=0
    _
  %s5 = ssub.s32 1, %s3
  %s6 = scalar_select 0, %s5, %s3
  %7 = sst [smem:[#allocation3]] %s0
  $region1: #{tpu_custom_call.1} parent=0
    #allocation4 [shape = 'u8[8192]{0}', space=vmem, size = 0x2000, scoped, tag = 'input window, operand 1, single buffered']
    #allocation5 [shape = 's32[1]{0}', space=sflag, size = 0x4, scoped, tag = 'scoped memory for tpu_custom_call.1']
    %8 = vsyncpa [#allocation5], 0
    // Predicated region
    $region2: #{tpu_custom_call.1} parent=1 // pred_check
      _
    $region3: #{tpu_custom_call.1} parent=1 // pred_check_branch
      %10 = sbr.rel (0) target = $region5
    $region4: #{tpu_custom_call.1} parent=1 // pred_region
      _
    $region5: #{tpu_custom_call.1} parent=1 // pred_fallthru
      _
    // Predicated region
    $region6: #{tpu_custom_call.1} parent=1 // pred_check
      _
    $region7: #{tpu_custom_call.1} parent=1 // pred_check_branch
      %12 = sbr.rel (0) target = $region9
    $region8: #{tpu_custom_call.1} parent=1 // pred_region
      %s14 = ssub.s32 256, 256
      %15 = vsyncadd [#allocation5], %s14
      %s17 = sshll.u32 [#allocation4], 4
      %s18 = int_to_ptr.vmem [resolvable:$true] %s17
      %20 = dma.hbm_to_vmem [thread:$0]  %s1, 256, %s18, [#allocation5]
    $region9: #{tpu_custom_call.1} parent=1 // pred_fallthru
      _
    // Predicated region
    $region10: #{tpu_custom_call.1} parent=1 // pred_check
      _
    $region11: #{tpu_custom_call.1} parent=1 // pred_check_branch
      %22 = sbr.rel (0) target = $region13
    $region12: #{tpu_custom_call.1} parent=1 // pred_region
      %23 = dma.done [#allocation5], 256
    $region13: #{tpu_custom_call.1} parent=1 // pred_fallthru
      _
    %p24 = scmp.eq.s32.totalorder 0, 0
    // Predicated region
    $region14: #{tpu_custom_call.1} parent=1 // pred_check
      %p25 = pneg %p24
    $region15: #{tpu_custom_call.1} parent=1 // pred_check_branch
      %27 = sbr.rel (%p25) target = $region17
    $region16: #{tpu_custom_call.1} parent=1 // pred_region
      %vm28 = vcmask 7168
      %29 = vst.msk [vmem:[#allocation2] sm:$0xff] %vm28, 0.0
    $region17: #{tpu_custom_call.1} parent=1 // pred_fallthru
      _
    %s30 = sld [smem:[#allocation3]]
    %v31 = vld [vmem:[#allocation4] sm:$0xff]
    %v32 = vld [vmem:[#allocation4 + $0x8] sm:$0xff]
    %v33 = vmax.f32 %v31, 1e-06
    %v34 = vmax.f32 %v32, 1e-06
    %v35 = vlog2.pop %v33
    %v36 = vmul.f32 %v35, 0.6931472
    %v37 = vlog2.pop %v34
    %v38 = vmul.f32 %v37, 0.6931472
    %v39 = vstv %s30
    %v40 = vmul.f32 %v39, %v36
    %v41 = vmul.f32 %v39, %v38
    %v42 = vmul.f32 %v40, 1.442695
    %v43 = vpow.pop %v42
    %v44 = vmul.f32 %v41, 1.442695
    %v45 = vpow.pop %v44
    %s46 = smul.u32 0, 256
    %v47 = vlaneseq
    %v48 = vand.u32 %v47, 127
    %v49 = vadd.s32 %v48, 128
    %v50 = vstv %s46
    %v51 = vadd.s32 %v50, %v48
    %v52 = vadd.s32 %v50, %v49
    %vm53 = vcmp.lt.s32.totalorder %v51, 256
    %vm54 = vcmp.lt.s32.totalorder %v52, 256
    %v55 = vsel %vm53, %v43, 0.0
    %v56 = vsel %vm54, %v45, 0.0
    %v57 = vld [vmem:[#allocation2] sm:$0xff]
    %v58 = vadd.f32 %v55, %v56
    %59 = vadd.xlane.f32.xlu0 %v58
    %v60 = vpop.xlane.xlu0 %59
    %v61 = vadd.f32 %v57, %v60
    %vm62 = vcmask 7168
    %63 = vst.msk [vmem:[#allocation2] sm:$0xff] %vm62, %v61
    // Predicated region
    $region18: #{tpu_custom_call.1} parent=1 // pred_check
      %p64 = pneg %p24
    $region19: #{tpu_custom_call.1} parent=1 // pred_check_branch
      %66 = sbr.rel (%p64) target = $region21
    $region20: #{tpu_custom_call.1} parent=1 // pred_region
      %v67 = vld [vmem:[#allocation2] sm:$0xff]
      %v68 = vmul.f32 %v67, 0.00390625
      %v69 = vlog2.pop %v68
      %v70 = vmul.f32 %v69, 0.6931472
      %v71 = vrcp.pop %v39
      %v72 = vmul.f32 %v70, %v71
      %v73 = vmul.f32 %v72, 1.442695
      %v74 = vpow.pop %v73
      %75 = vst.msk [vmem:[%s2] sm:$0xff] %vm62, %v74
    $region21: #{tpu_custom_call.1} parent=1 // pred_fallthru
      _
    // Predicated region
    $region22: #{tpu_custom_call.1} parent=1 // pred_check
      _
    $region23: #{tpu_custom_call.1} parent=1 // pred_check_branch
      %77 = sbr.rel (0) target = $region25
    $region24: #{tpu_custom_call.1} parent=1 // pred_region
      _
    $region25: #{tpu_custom_call.1} parent=1 // pred_fallthru
      _
    // Predicated region
    $region26: #{tpu_custom_call.1} parent=1 // pred_check
      _
    $region27: #{tpu_custom_call.1} parent=1 // pred_check_branch
      %79 = sbr.rel (0) target = $region29
    $region28: #{tpu_custom_call.1} parent=1 // pred_region
      _
    $region29: #{tpu_custom_call.1} parent=1 // pred_fallthru
      _
    %80 = vsyncpa [#allocation5], 1

</llo_original>
